<compile_context>
chip_gen: v5e
topology: v5e:2x2
jax: 0.10.0
libtpu: 0.0.40
codegen_flags: <defaults>
</compile_context>

<pallas_src>
import jax
import jax.numpy as jnp
from jax.experimental import pallas as pl
from jax.experimental.pallas import tpu as pltpu

_LANE = 128
_SUBLANE = 8


def _round_up(x, m):
    return ((x + m - 1) // m) * m


def _mlp_kernel(x_ref, w_ref, b_ref, o_ref):
    # x_ref: (TM, K)   w_ref: (K, N)   b_ref: (1, N)   o_ref: (TM, N)
    acc = jnp.dot(x_ref[...], w_ref[...], preferred_element_type=jnp.float32)
    o_ref[...] = (acc + b_ref[...].astype(jnp.float32)).astype(o_ref.dtype)


def prepare_segformer_mlp_params(weight, bias, param_dtype=None):
    """One-time parameter prep.

    Hoists the torch-layout (C_out, C_in) -> (C_in, C_out) transpose out of the
    per-forward path and makes the bias a lane-dense (1, C_out) f32 row.
    Pass param_dtype=jnp.bfloat16 to halve the resident-weight footprint and
    feed the MXU its native dtype (the accumulate stays f32 in the kernel).
    """
    w_t = weight.T
    if param_dtype is not None:
        w_t = w_t.astype(param_dtype)
    return w_t, bias.reshape(1, -1).astype(jnp.float32)


def _vmem_config():
    """Generation-aware (scoped-VMEM limit, tile VMEM budget) in bytes."""
    cap = None
    try:
        cap = getattr(pltpu.get_tpu_info(), "vmem_capacity_bytes", None)
    except Exception:
        cap = None
    if not cap or cap <= 0:
        cap = 64 * 1024 * 1024            # conservative: assume v7x-sized VMEM
    if cap >= 100 * 1024 * 1024:          # v5e / v6e: 128 MiB physical
        limit = 64 * 1024 * 1024
    else:                                 # v7x: 64 MiB physical per TC
        limit = 40 * 1024 * 1024
    budget = limit - 6 * 1024 * 1024      # headroom for compiler scratch
    return limit, budget


def _pick_tile_m(M, C_in, C_out, in_bytes, out_bytes, w_bytes,
                 tile_m_cap, vmem_budget_bytes):
    """Derive a row tile from the VMEM budget; lane padding of C_in/C_out included."""
    c_in_pad = _round_up(C_in, _LANE)
    c_out_pad = _round_up(C_out, _LANE)
    # Double-buffered x block + double-buffered out block, per row:
    per_row = 2 * c_in_pad * in_bytes + 2 * c_out_pad * out_bytes
    # Resident weight + bias (conservatively counted double-buffered):
    fixed = (2 * _round_up(C_in, _SUBLANE) * c_out_pad * w_bytes
             + 2 * _SUBLANE * c_out_pad * 4)
    budget = max(vmem_budget_bytes - fixed, per_row * _SUBLANE)
    tile_m = budget // per_row
    tile_m = min(tile_m, tile_m_cap, _round_up(M, _SUBLANE))
    if tile_m >= _LANE:
        tile_m = (tile_m // _LANE) * _LANE        # prefer multiples of 128
    else:
        tile_m = max(_SUBLANE, (tile_m // _SUBLANE) * _SUBLANE)
    return int(tile_m)


def segformer_mlp(hidden_states, weight_t, bias2d, *, tile_m=None, tile_m_cap=8192,
                  out_dtype=None, vmem_limit_bytes=None, vmem_budget_bytes=None,
                  dimension_semantics=("parallel",)):
    """SegformerMLP forward.

    hidden_states: (..., C_in)  channels-last activations.
    weight_t:      (C_in, C_out) pre-transposed nn.Linear weight
                   (see prepare_segformer_mlp_params).
    bias2d:        (1, C_out) f32.
    out_dtype:     output dtype; pass jnp.bfloat16 to halve the dominant HBM
                   write stream (accumulation stays f32).
    dimension_semantics: pass (pltpu.CORE_PARALLEL,) on v7x to shard the row-tile
                   axis across both TensorCores.
    """
    *lead, C_in = hidden_states.shape
    C_out = weight_t.shape[1]
    M = 1
    for d in lead:
        M *= d
    out_dtype = hidden_states.dtype if out_dtype is None else out_dtype

    x2d = hidden_states.reshape(M, C_in)

    limit, budget = _vmem_config()
    if vmem_limit_bytes is not None:
        limit = vmem_limit_bytes
    if vmem_budget_bytes is not None:
        budget = vmem_budget_bytes

    if tile_m is None:
        tile_m = _pick_tile_m(
            M, C_in, C_out,
            jnp.dtype(hidden_states.dtype).itemsize,
            jnp.dtype(out_dtype).itemsize,
            jnp.dtype(weight_t.dtype).itemsize,
            tile_m_cap, budget)
    assert tile_m % _SUBLANE == 0, "tile_m must be a multiple of 8 (sublane)"

    # Ragged M: no wrapper pad/slice.  Pallas pads the read of the partial last
    # x block and masks the write of the partial last out block; padded rows are
    # row-independent garbage that is never written back.
    num_tiles = pl.cdiv(M, tile_m)

    out2d = pl.pallas_call(
        _mlp_kernel,
        out_shape=jax.ShapeDtypeStruct((M, C_out), out_dtype),
        grid_spec=pltpu.PrefetchScalarGridSpec(
            num_scalar_prefetch=0,
            grid=(num_tiles,),
            in_specs=[
                pl.BlockSpec((tile_m, C_in), lambda i: (i, 0)),   # streamed rows
                pl.BlockSpec((C_in, C_out), lambda i: (0, 0)),    # resident weight
                pl.BlockSpec((1, C_out), lambda i: (0, 0)),       # resident bias
            ],
            out_specs=pl.BlockSpec((tile_m, C_out), lambda i: (i, 0)),
        ),
        compiler_params=pltpu.CompilerParams(
            dimension_semantics=dimension_semantics,
            vmem_limit_bytes=limit,
        ),
    )(x2d, weight_t, bias2d)

    return out2d.reshape(*lead, C_out)


if __name__ == "__main__":
    # Config-implied shapes: input_dim = hidden_sizes[0] = 32, decoder_hidden_size = 256.
    C_in, C_out = 32, 256
    key = jax.random.PRNGKey(0)
    kx, kw, kb, kx2 = jax.random.split(key, 4)

    bound = 1.0 / (C_in ** 0.5)
    weight = jax.random.uniform(kw, (C_out, C_in), minval=-bound, maxval=bound,
                                dtype=jnp.float32)   # torch nn.Linear layout
    bias = jax.random.uniform(kb, (C_out,), minval=-bound, maxval=bound,
                              dtype=jnp.float32)
    weight_t, bias2d = prepare_segformer_mlp_params(weight, bias)

    # Case 1: small (B=2, S=16) — auto tile selection, divisible M.
    B, S = 2, 16
    x = jax.random.normal(kx, (B, S, C_in), dtype=jnp.float32)
    out = segformer_mlp(x, weight_t, bias2d)
    jax.block_until_ready(out)
    ref = x @ weight.T + bias
    assert out.shape == (B, S, C_out)
    assert jnp.allclose(out, ref, atol=1e-5, rtol=1e-5)

    # Case 2: ragged M (2 * 225 = 450 rows) with tile_m=128 -> grid of 4 row
    # tiles, exercising the in-kernel masked partial last block (no wrapper
    # pad / slice HBM passes).
    B2, HW2 = 2, 15 * 15
    x2 = jax.random.normal(kx2, (B2, HW2, C_in), dtype=jnp.float32)
    out2 = segformer_mlp(x2, weight_t, bias2d, tile_m=128)
    jax.block_until_ready(out2)
    ref2 = x2 @ weight.T + bias
    assert out2.shape == (B2, HW2, C_out)
    assert jnp.allclose(out2, ref2, atol=1e-5, rtol=1e-5)

    # Case 3: full bf16 path (bf16 activations, bf16 resident weight, bf16
    # output; f32 accumulate).  Roughly halves total HBM traffic.
    weight_t_bf16, bias2d_f32 = prepare_segformer_mlp_params(
        weight, bias, param_dtype=jnp.bfloat16)
    out_bf16 = segformer_mlp(x.astype(jnp.bfloat16), weight_t_bf16, bias2d_f32)
    jax.block_until_ready(out_bf16)
    assert out_bf16.dtype == jnp.bfloat16
    assert jnp.allclose(out_bf16.astype(jnp.float32), ref, atol=5e-2, rtol=5e-2)

    print("KERNEL_OK")
</pallas_src>

<mosaic_0001>
module attributes {stable_mosaic.version = 11 : i64} {
  func.func @_mlp_kernel(%arg0: i32, %arg1: memref<32x32xf32, #tpu.memory_space<vmem>>, %arg2: memref<32x256xf32, #tpu.memory_space<vmem>>, %arg3: memref<1x256xf32, #tpu.memory_space<vmem>>, %arg4: memref<32x256xf32, #tpu.memory_space<vmem>>) attributes {dimension_semantics = [#tpu.dimension_semantics<parallel>], iteration_bounds = array<i64: 1>, scalar_prefetch = 0 : i64, scratch_operands = 0 : i64, tpu.core_type = #tpu.core_type<tc>, window_params = [{transform_indices = @transform_0, window_bounds = array<i64: 32, 32>}, {pipeline_mode = #tpu.pipeline_mode<synchronous>, transform_indices = @transform_1, window_bounds = array<i64: 32, 256>}, {pipeline_mode = #tpu.pipeline_mode<synchronous>, transform_indices = @transform_2, window_bounds = array<i64: 1, 256>}, {transform_indices = @transform_3, window_bounds = array<i64: 32, 256>}]} {
    %c0 = arith.constant 0 : index
    %c0_0 = arith.constant 0 : index
    %0 = vector.load %arg1[%c0, %c0_0] : memref<32x32xf32, #tpu.memory_space<vmem>>, vector<32x32xf32>
    %c0_1 = arith.constant 0 : index
    %c0_2 = arith.constant 0 : index
    %1 = vector.load %arg2[%c0_1, %c0_2] : memref<32x256xf32, #tpu.memory_space<vmem>>, vector<32x256xf32>
    %cst = arith.constant dense<0.000000e+00> : vector<32x256xf32>
    %2 = tpu.matmul %0, %1, %cst {dimension_numbers = #tpu.dot_dimension_numbers<[1], [0], [0], [1], [0, 0, 1, 1], [], []>} : vector<32x32xf32>, vector<32x256xf32>, vector<32x256xf32> -> vector<32x256xf32>
    %c0_3 = arith.constant 0 : index
    %c0_4 = arith.constant 0 : index
    %3 = vector.load %arg3[%c0_3, %c0_4] : memref<1x256xf32, #tpu.memory_space<vmem>>, vector<1x256xf32>
    %4 = vector.broadcast %3 : vector<1x256xf32> to vector<32x256xf32>
    %5 = arith.addf %2, %4 : vector<32x256xf32>
    %c0_5 = arith.constant 0 : index
    %c0_6 = arith.constant 0 : index
    %6 = vector.load %arg4[%c0_5, %c0_6] : memref<32x256xf32, #tpu.memory_space<vmem>>, vector<32x256xf32>
    tpu.vector_store %arg4[%c0_5, %c0_6], %5 {strides = array<i32>} : memref<32x256xf32, #tpu.memory_space<vmem>>, vector<32x256xf32>,
    return
  }
  func.func @transform_0(%arg0: i32) -> (i32, i32) {
    %c0_i32 = arith.constant 0 : i32
    %c0_i32_0 = arith.constant 0 : i32
    return %arg0, %c0_i32 : i32, i32
  }
  func.func @transform_1(%arg0: i32) -> (i32, i32) {
    %c0_i32 = arith.constant 0 : i32
    %c0_i32_0 = arith.constant 0 : i32
    %c0_i32_1 = arith.constant 0 : i32
    return %c0_i32, %c0_i32_0 : i32, i32
  }
  func.func @transform_2(%arg0: i32) -> (i32, i32) {
    %c0_i32 = arith.constant 0 : i32
    %c0_i32_0 = arith.constant 0 : i32
    %c0_i32_1 = arith.constant 0 : i32
    return %c0_i32, %c0_i32_0 : i32, i32
  }
  func.func @transform_3(%arg0: i32) -> (i32, i32) {
    %c0_i32 = arith.constant 0 : i32
    %c0_i32_0 = arith.constant 0 : i32
    return %arg0, %c0_i32 : i32, i32
  }
}

</mosaic_0001>

<llo_original>
// kernel: tpu_custom_call.1
$region0: #{tpu_custom_call.1}
  #allocation0 [shape = 'u32[]', space=smem, size = 0x4, offset = 0x4, fixed_abs, tag = 'smem constant byte address 0x4 - core index']
  #allocation1 [shape = 'u32[72,128]{1,0:T(1,128)}', space=vmem, size = 0x9000, scoped, tag = 'internal scratch']
  %s0 = inlined_call_operand.hbm [shape: f32[32,32], index: 0, kind: input, shape index: {}]
  %s1 = inlined_call_operand.hbm [shape: f32[32,256], index: 1, kind: input, shape index: {}]
  %s2 = inlined_call_operand.hbm [shape: f32[1,256], index: 2, kind: input, shape index: {}]
  %s3 = inlined_call_operand.hbm [shape: f32[32,256], index: 3, kind: output, shape index: {}]
  %s4 = sld [smem:[#allocation0]]
  $region34: #{tpu_custom_call.1} parent=0
    _
  %s6 = ssub.s32 1, %s4
  %s7 = scalar_select 0, %s6, %s4
  $region1: #{tpu_custom_call.1} parent=0
    #allocation2 [shape = 'u8[16384]{0}', space=vmem, size = 0x4000, scoped, tag = 'input window, operand 0, single buffered']
    #allocation3 [shape = 's32[1]{0}', space=sflag, size = 0x4, scoped, tag = 'scoped memory for tpu_custom_call.1']
    #allocation4 [shape = 's32[1]{0}', space=sflag, size = 0x4, scoped, tag = 'scoped memory for tpu_custom_call.1']
    #allocation5 [shape = 'u8[32768]{0}', space=vmem, size = 0x8000, scoped, tag = 'input window, operand 1, single buffered']
    #allocation6 [shape = 's32[1]{0}', space=sflag, size = 0x4, scoped, tag = 'scoped memory for tpu_custom_call.1']
    #allocation7 [shape = 'u8[1024]{0}', space=vmem, size = 0x400, scoped, tag = 'input window, operand 2, single buffered']
    #allocation8 [shape = 'u8[32768]{0}', space=vmem, size = 0x8000, scoped, tag = 'output window, operand 0, single buffered']
    %8 = vsyncpa [#allocation3], 0
    %9 = vsyncpa [#allocation6], 0
    %10 = vsyncpa [#allocation4], 0
    // Predicated region
    $region2: #{tpu_custom_call.1} parent=1 // pred_check
      _
    $region3: #{tpu_custom_call.1} parent=1 // pred_check_branch
      %12 = sbr.rel (0) target = $region5
    $region4: #{tpu_custom_call.1} parent=1 // pred_region
      %14 = vsyncadd [#allocation3], 0
      %s15 = sshll.u32 %s0, 4
      %s16 = int_to_ptr.hbm [resolvable:$true] %s15
      %s17 = sshll.u32 [#allocation2], 4
      %s18 = int_to_ptr.vmem [resolvable:$true] %s17
      %23 = dma.hbm_to_vmem [thread:$0]  %s16, 512, %s18, [#allocation3], 128, 128, 8
    $region5: #{tpu_custom_call.1} parent=1 // pred_fallthru
      _
    // Predicated region
    $region6: #{tpu_custom_call.1} parent=1 // pred_check
      _
    $region7: #{tpu_custom_call.1} parent=1 // pred_check_branch
      %25 = sbr.rel (0) target = $region9
    $region8: #{tpu_custom_call.1} parent=1 // pred_region
      %27 = vsyncadd [#allocation6], 0
      %s28 = sshll.u32 %s1, 4
      %s29 = int_to_ptr.hbm [resolvable:$true] %s28
      %s30 = sshll.u32 [#allocation5], 4
      %s31 = int_to_ptr.vmem [resolvable:$true] %s30
      %36 = dma.hbm_to_vmem [thread:$0]  %s29, 1024, %s31, [#allocation6], 256, 256, 16
    $region9: #{tpu_custom_call.1} parent=1 // pred_fallthru
      _
    // Predicated region
    $region10: #{tpu_custom_call.1} parent=1 // pred_check
      _
    $region11: #{tpu_custom_call.1} parent=1 // pred_check_branch
      %38 = sbr.rel (0) target = $region13
    $region12: #{tpu_custom_call.1} parent=1 // pred_region
      %40 = vsyncadd [#allocation6], 0
      %s42 = sshll.u32 %s2, 4
      %s43 = int_to_ptr.hbm [resolvable:$true] %s42
      %s44 = sshll.u32 [#allocation7], 4
      %s45 = int_to_ptr.vmem [resolvable:$true] %s44
      %47 = dma.hbm_to_vmem [thread:$0]  %s43, 32, %s45, [#allocation6]
    $region13: #{tpu_custom_call.1} parent=1 // pred_fallthru
      _
    // Predicated region
    $region14: #{tpu_custom_call.1} parent=1 // pred_check
      _
    $region15: #{tpu_custom_call.1} parent=1 // pred_check_branch
      %49 = sbr.rel (0) target = $region17
    $region16: #{tpu_custom_call.1} parent=1 // pred_region
      %51 = dma.done [#allocation3], 512
    $region17: #{tpu_custom_call.1} parent=1 // pred_fallthru
      _
    // Predicated region
    $region18: #{tpu_custom_call.1} parent=1 // pred_check
      _
    $region19: #{tpu_custom_call.1} parent=1 // pred_check_branch
      %53 = sbr.rel (0) target = $region21
    $region20: #{tpu_custom_call.1} parent=1 // pred_region
      %55 = dma.done [#allocation6], 1024
    $region21: #{tpu_custom_call.1} parent=1 // pred_fallthru
      _
    // Predicated region
    $region22: #{tpu_custom_call.1} parent=1 // pred_check
      _
    $region23: #{tpu_custom_call.1} parent=1 // pred_check_branch
      %57 = sbr.rel (0) target = $region25
    $region24: #{tpu_custom_call.1} parent=1 // pred_region
      %59 = dma.done [#allocation6], 32
    $region25: #{tpu_custom_call.1} parent=1 // pred_fallthru
      _
    %v60 = vld [vmem:[#allocation2] sm:$0xff]
    %v61 = vld [vmem:[#allocation2 + $0x8] sm:$0xff]
    %v62 = vld [vmem:[#allocation2 + $0x10] sm:$0xff]
    %v63 = vld [vmem:[#allocation2 + $0x18] sm:$0xff]
    %v64 = vld [vmem:[#allocation5] sm:$0xff]
    %v65 = vld [vmem:[#allocation5 + $0x8] sm:$0xff]
    %v66 = vld [vmem:[#allocation5 + $0x10] sm:$0xff]
    %v67 = vld [vmem:[#allocation5 + $0x18] sm:$0xff]
    %v68 = vld [vmem:[#allocation5 + $0x20] sm:$0xff]
    %v69 = vld [vmem:[#allocation5 + $0x28] sm:$0xff]
    %v70 = vld [vmem:[#allocation5 + $0x30] sm:$0xff]
    %v71 = vld [vmem:[#allocation5 + $0x38] sm:$0xff]
    %v72 = vld [vmem:[#allocation7] sm:$0x3]
    %v74 = vperm.slane %v72, 0
    %v75 = vperm.slane %v72, 1
    %vm78 = vcmask 261120
    %v80 = vsel %vm78, %v60, 0
    %v83 = vsel %vm78, %v61, 0
    %v86 = vsel %vm78, %v62, 0
    %v89 = vsel %vm78, %v63, 0
    %91 = vmatpush.msra.mxu0 0.0
    %92 = vmatpush.msra.mxu0 0.0
    %93 = vmatpush.msra.mxu0 0.0
    %94 = vmatpush.msra.mxu0 0.0
    %95 = vmatpush.msra.mxu0 0.0
    %96 = vmatpush.msra.mxu0 0.0
    %97 = vmatpush.msra.mxu0 0.0
    %98 = vmatpush.msra.mxu0 0.0
    %99 = vmatpush.msra.mxu0 0.0
    %100 = vmatpush.msra.mxu0 0.0
    %101 = vmatpush.msra.mxu0 0.0
    %102 = vmatpush.msra.mxu0 0.0
    %103 = vmatpush.msra.mxu0 %v70
    %104 = vmatpush.msra.mxu0 %v68
    %105 = vmatpush.msra.mxu0 %v66
    %106 = vmatpush.msra.mxu0 %v64
    %107 = vmatmul.f32.gmra.mxu0 %v80
    %v108 = vpop.f32.mrf.mxu0
    %v109 = vadd.f32 %v74, %v108
    %110 = vmatmul.f32.gmra.mxu0 %v83
    %v111 = vpop.f32.mrf.mxu0
    %v112 = vadd.f32 %v74, %v111
    %113 = vmatmul.f32.gmra.mxu0 %v86
    %v114 = vpop.f32.mrf.mxu0
    %v115 = vadd.f32 %v74, %v114
    %116 = vmatmul.f32.gmra.mxu0 %v89
    %v117 = vpop.f32.mrf.mxu0
    %v118 = vadd.f32 %v74, %v117
    %119 = vdwg.mxu0
    %120 = vmatpush.msra.mxu0 0.0
    %121 = vmatpush.msra.mxu0 0.0
    %122 = vmatpush.msra.mxu0 0.0
    %123 = vmatpush.msra.mxu0 0.0
    %124 = vmatpush.msra.mxu0 0.0
    %125 = vmatpush.msra.mxu0 0.0
    %126 = vmatpush.msra.mxu0 0.0
    %127 = vmatpush.msra.mxu0 0.0
    %128 = vmatpush.msra.mxu0 0.0
    %129 = vmatpush.msra.mxu0 0.0
    %130 = vmatpush.msra.mxu0 0.0
    %131 = vmatpush.msra.mxu0 0.0
    %132 = vmatpush.msra.mxu0 %v71
    %133 = vmatpush.msra.mxu0 %v69
    %134 = vmatpush.msra.mxu0 %v67
    %135 = vmatpush.msra.mxu0 %v65
    %136 = vmatmul.f32.gmra.mxu0 %v80
    %v137 = vpop.f32.mrf.mxu0
    %v138 = vadd.f32 %v75, %v137
    %139 = vmatmul.f32.gmra.mxu0 %v83
    %v140 = vpop.f32.mrf.mxu0
    %v141 = vadd.f32 %v75, %v140
    %142 = vmatmul.f32.gmra.mxu0 %v86
    %v143 = vpop.f32.mrf.mxu0
    %v144 = vadd.f32 %v75, %v143
    %145 = vmatmul.f32.gmra.mxu0 %v89
    %v146 = vpop.f32.mrf.mxu0
    %v147 = vadd.f32 %v75, %v146
    %148 = vdwg.mxu0
    %149 = vst [vmem:[#allocation8] sm:$0xff] %v109
    %150 = vst [vmem:[#allocation8 + $0x8] sm:$0xff] %v138
    %151 = vst [vmem:[#allocation8 + $0x10] sm:$0xff] %v112
    %152 = vst [vmem:[#allocation8 + $0x18] sm:$0xff] %v141
    %153 = vst [vmem:[#allocation8 + $0x20] sm:$0xff] %v115
    %154 = vst [vmem:[#allocation8 + $0x28] sm:$0xff] %v144
    %155 = vst [vmem:[#allocation8 + $0x30] sm:$0xff] %v118
    %156 = vst [vmem:[#allocation8 + $0x38] sm:$0xff] %v147
    // Predicated region
    $region26: #{tpu_custom_call.1} parent=1 // pred_check
      _
    $region27: #{tpu_custom_call.1} parent=1 // pred_check_branch
      %158 = sbr.rel (0) target = $region29
    $region28: #{tpu_custom_call.1} parent=1 // pred_region
      %160 = vsyncadd [#allocation4], 0
      %s161 = sshll.u32 [#allocation8], 4
      %s162 = int_to_ptr.vmem [resolvable:$true] %s161
      %s163 = sshll.u32 %s3, 4
      %s164 = int_to_ptr.hbm [resolvable:$true] %s163
      %169 = dma.vmem_to_hbm [thread:$0]  %s162, 1024, %s164, [#allocation4], 256, 256, 16
    $region29: #{tpu_custom_call.1} parent=1 // pred_fallthru
      _
    // Predicated region
    $region30: #{tpu_custom_call.1} parent=1 // pred_check
      _
    $region31: #{tpu_custom_call.1} parent=1 // pred_check_branch
      %171 = sbr.rel (0) target = $region33
    $region32: #{tpu_custom_call.1} parent=1 // pred_region
      %173 = dma.done [#allocation4], 1024
    $region33: #{tpu_custom_call.1} parent=1 // pred_fallthru
      _
    %174 = vsyncpa [#allocation3], 1
    %175 = vsyncpa [#allocation6], 1
    %176 = vsyncpa [#allocation4], 1

</llo_original>
